<compile_context>
chip_gen: v5e
topology: v5e:2x2
jax: 0.10.0
libtpu: 0.0.40
codegen_flags: <defaults>
</compile_context>

<pallas_src>
import math

import jax
import jax.numpy as jnp
from jax.experimental import pallas as pl
from jax.experimental.pallas import tpu as pltpu


# --------------------------------------------------------------------------
# helpers
# --------------------------------------------------------------------------

def _sublane_multiple(dtype):
    """Sublane packing: 8 for 32-bit, 16 for 16-bit, 32 for 8-bit dtypes."""
    return max(8, 32 // max(1, jnp.dtype(dtype).itemsize))


def _vmem_limit_bytes():
    """Generation-aware scoped-VMEM limit: ~3/4 of physical VMEM per core."""
    try:
        cap = int(pltpu.get_tpu_info().vmem_capacity_bytes)
    except Exception:
        cap = 64 * 1024 * 1024      # conservative (v7x-sized) fallback
    return (cap * 3) // 4


def _row_chunks(n_rows, n_chunks):
    """Split [0, n_rows) into <= n_chunks contiguous (start, size) pieces."""
    n_chunks = max(1, min(n_chunks, n_rows))
    base, rem = divmod(n_rows, n_chunks)
    chunks, start = [], 0
    for c in range(n_chunks):
        size = base + (1 if c < rem else 0)
        if size:
            chunks.append((start, size))
            start += size
    return chunks


# --------------------------------------------------------------------------
# Path 1: pure HBM->HBM DMA concat (no VMEM / vreg traffic at all)
# --------------------------------------------------------------------------

def _make_dma_concat_kernel(n_inputs, plan):
    def kernel(*refs):
        in_refs = refs[:n_inputs]
        out_ref = refs[n_inputs]
        sem = refs[n_inputs + 1]
        copies = []
        for j, (idx, src_sl, dst_sl) in enumerate(plan):
            cp = pltpu.make_async_copy(in_refs[idx].at[src_sl],
                                       out_ref.at[dst_sl],
                                       sem.at[j])
            cp.start()
            copies.append(cp)
        for cp in copies:            # keep all copies in flight, then drain
            cp.wait()
    return kernel


def _concat2d_dma(xs2d, offsets, out2d_shape, out_dtype, concat_axis,
                  target_dmas=8, min_chunk_bytes=256 * 1024):
    n = len(xs2d)
    per_input = max(1, -(-target_dmas // n))            # ceil(target / n)
    plan = []
    for i, x2 in enumerate(xs2d):
        rows, cols = int(x2.shape[0]), int(x2.shape[1])
        nbytes = rows * cols * x2.dtype.itemsize
        want = min(per_input, rows, max(1, nbytes // min_chunk_bytes))
        for r0, rc in _row_chunks(rows, want):
            src = (slice(r0, r0 + rc), slice(None))
            if concat_axis == 1:     # column concat: shared rows, offset cols
                dst = (slice(r0, r0 + rc),
                       slice(offsets[i], offsets[i] + cols))
            else:                    # row concat (dim==0 style): offset rows
                dst = (slice(offsets[i] + r0, offsets[i] + r0 + rc),
                       slice(None))
            plan.append((i, src, dst))

    out_bytes = int(math.prod(out2d_shape)) * jnp.dtype(out_dtype).itemsize
    in_bytes = sum(int(x.size) * x.dtype.itemsize for x in xs2d)

    return pl.pallas_call(
        _make_dma_concat_kernel(n, plan),
        out_shape=jax.ShapeDtypeStruct(out2d_shape, out_dtype),
        in_specs=[pl.BlockSpec(memory_space=pl.ANY)] * n,
        out_specs=pl.BlockSpec(memory_space=pl.ANY),
        scratch_shapes=[pltpu.SemaphoreType.DMA((len(plan),))],
        cost_estimate=pl.CostEstimate(flops=0, transcendentals=0,
                                      bytes_accessed=in_bytes + out_bytes),
    )(*xs2d)


# --------------------------------------------------------------------------
# Path 2: mixed dtypes -> row-tiled VMEM copy with the cast fused in
# --------------------------------------------------------------------------

def _make_vmem_concat_kernel(offsets, widths, out_dtype):
    def kernel(*refs):
        out_ref = refs[-1]
        in_refs = refs[:-1]
        for r, off, w in zip(in_refs, offsets, widths):
            # Static slices; the promotion cast rides along with the copy and
            # hides under the pipeline DMAs.
            out_ref[:, off:off + w] = r[...].astype(out_dtype)
    return kernel


# --------------------------------------------------------------------------
# public wrapper == TableModule.forward(x, dim)
# --------------------------------------------------------------------------

def table_module_forward(xs, dim, *, target_dmas=8):
    """JAX/Pallas equivalent of TableModule.forward(x, dim) = torch.cat(x, dim)."""
    xs = list(xs)
    if not xs:
        raise ValueError("concat of an empty sequence is undefined")
    ndim = xs[0].ndim
    dim = dim % ndim

    out_dtype = jnp.result_type(*xs)         # torch.cat / jnp promotion rules
    base = tuple(xs[0].shape)
    for x in xs[1:]:
        if x.ndim != ndim:
            raise ValueError("all inputs must have the same rank")
        for ax in range(ndim):
            if ax != dim and x.shape[ax] != base[ax]:
                raise ValueError(
                    f"non-concat dim {ax} mismatch: {tuple(x.shape)} vs {base}")

    out_full_shape = (base[:dim]
                      + (sum(int(x.shape[dim]) for x in xs),)
                      + base[dim + 1:])
    if math.prod(out_full_shape) == 0:
        return jnp.zeros(out_full_shape, out_dtype)

    # Inputs that are empty along the concat dim contribute nothing.
    xs = [x for x in xs if int(x.shape[dim]) > 0]

    L = int(math.prod(base[:dim]))           # rows shared by every input
    R = int(math.prod(base[dim + 1:]))       # contiguous tail per concat slice

    if L > 1:
        concat_axis = 1                      # lane-dense column concat
        sizes2d = [int(x.shape[dim]) * R for x in xs]
        xs2d = [x.reshape(L, s) for x, s in zip(xs, sizes2d)]
        out2d_shape = (L, sum(sizes2d))
    else:
        concat_axis = 0                      # dim==0 style: pure row concat
        sizes2d = [int(x.shape[dim]) for x in xs]
        xs2d = [x.reshape(s, R) for x, s in zip(xs, sizes2d)]
        out2d_shape = (sum(sizes2d), R)

    offsets, off = [], 0
    for s in sizes2d:
        offsets.append(off)
        off += s

    # ---- fast path: every input already in the output dtype -> HBM->HBM DMA
    if all(x.dtype == out_dtype for x in xs2d):
        out2d = _concat2d_dma(xs2d, offsets, out2d_shape, out_dtype,
                              concat_axis, target_dmas=target_dmas)
        return out2d.reshape(out_full_shape)

    # ---- mixed dtypes: fuse the promotion cast into a tiled VMEM copy
    if concat_axis == 1:
        widths = sizes2d
        w_total = out2d_shape[1]
        out_itemsize = jnp.dtype(out_dtype).itemsize
        vmem_limit = _vmem_limit_bytes()
        budget = vmem_limit // 2             # headroom for Mosaic scratch
        # Per grid step: every input tile + the output tile, double-buffered.
        bytes_per_row = (2 * sum(w * x.dtype.itemsize
                                 for w, x in zip(widths, xs2d))
                         + 2 * w_total * out_itemsize)
        sub_mult = max([_sublane_multiple(out_dtype)]
                       + [_sublane_multiple(x.dtype) for x in xs2d])
        if min(L, sub_mult) * bytes_per_row <= budget:
            tl = min(L, max(1, budget // bytes_per_row))
            if L >= 2 * sub_mult:            # >=2 grid steps -> both v7x cores
                tl = min(tl, -(-L // 2))
            tl = ((tl // sub_mult) * sub_mult if tl >= sub_mult
                  else min(L, sub_mult))
            grid = (pl.cdiv(L, tl),)
            bytes_accessed = (sum(int(x.size) * x.dtype.itemsize for x in xs2d)
                              + L * w_total * out_itemsize)
            out2d = pl.pallas_call(
                _make_vmem_concat_kernel(offsets, widths, out_dtype),
                out_shape=jax.ShapeDtypeStruct((L, w_total), out_dtype),
                grid=grid,
                in_specs=[pl.BlockSpec((tl, w), lambda i: (i, 0))
                          for w in widths],
                out_specs=pl.BlockSpec((tl, w_total), lambda i: (i, 0)),
                compiler_params=pltpu.CompilerParams(
                    dimension_semantics=("parallel",),
                    vmem_limit_bytes=vmem_limit),
                cost_estimate=pl.CostEstimate(flops=0, transcendentals=0,
                                              bytes_accessed=bytes_accessed),
            )(*xs2d)
            return out2d.reshape(out_full_shape)

    # ---- fallback: mixed dtype with dim==0 layout or rows too wide for VMEM
    xs2d = [x.astype(out_dtype) for x in xs2d]
    out2d = _concat2d_dma(xs2d, offsets, out2d_shape, out_dtype,
                          concat_axis, target_dmas=target_dmas)
    return out2d.reshape(out_full_shape)


if __name__ == "__main__":
    key = jax.random.PRNGKey(0)
    k1, k2, k3 = jax.random.split(key, 3)

    # 1) NCHW concat along channels (DMA path, column-concat 2-D views).
    a = jax.random.normal(k1, (2, 4, 16, 16), dtype=jnp.float32)
    b = jax.random.normal(k2, (2, 3, 16, 16), dtype=jnp.float32)
    c = jax.random.normal(k3, (2, 5, 16, 16), dtype=jnp.float32)
    out = jax.block_until_ready(table_module_forward([a, b, c], dim=1))
    assert out.shape == (2, 12, 16, 16)
    assert jnp.array_equal(out, jnp.concatenate([a, b, c], axis=1))

    # 2) Negative dim with non-128-aligned widths (DMA handles any offset).
    d = jax.random.normal(k1, (2, 4, 16, 8), dtype=jnp.float32)
    e = jax.random.normal(k2, (2, 4, 16, 24), dtype=jnp.float32)
    out2 = jax.block_until_ready(table_module_forward([d, e], dim=-1))
    assert out2.shape == (2, 4, 16, 32)
    assert jnp.array_equal(out2, jnp.concatenate([d, e], axis=-1))

    # 3) Larger case -> several row-chunked DMAs in flight per input.
    f = jax.random.normal(k1, (16, 128, 256), dtype=jnp.float32)
    g = jax.random.normal(k2, (16, 128, 128), dtype=jnp.float32)
    out3 = jax.block_until_ready(table_module_forward([f, g], dim=2))
    assert out3.shape == (16, 128, 384)
    assert jnp.array_equal(out3, jnp.concatenate([f, g], axis=2))

    # 4) dim=0 concat (row-concat views, fully contiguous DMAs).
    h = jax.random.normal(k3, (3, 8, 128), dtype=jnp.float32)
    i = jax.random.normal(k1, (5, 8, 128), dtype=jnp.float32)
    out4 = jax.block_until_ready(table_module_forward([h, i], dim=0))
    assert out4.shape == (8, 8, 128)
    assert jnp.array_equal(out4, jnp.concatenate([h, i], axis=0))

    # 5) Mixed dtypes -> promotion cast fused into the tiled VMEM copy kernel.
    m1 = jax.random.normal(k1, (2, 4, 16, 16), dtype=jnp.float32)
    m2 = jax.random.normal(k2, (2, 4, 16, 16), dtype=jnp.bfloat16)
    out5 = jax.block_until_ready(table_module_forward([m1, m2], dim=-1))
    assert out5.dtype == jnp.float32
    assert jnp.array_equal(out5, jnp.concatenate([m1, m2], axis=-1))

    # 6) Mixed dtypes on dim=0 -> wrapper-cast + DMA fallback path.
    n1 = jax.random.normal(k1, (2, 8, 128), dtype=jnp.float32)
    n2 = jax.random.normal(k2, (3, 8, 128), dtype=jnp.bfloat16)
    out6 = jax.block_until_ready(table_module_forward([n1, n2], dim=0))
    assert out6.shape == (5, 8, 128)
    assert jnp.array_equal(out6, jnp.concatenate([n1, n2], axis=0))

    print("KERNEL_OK")
</pallas_src>

<mosaic_0001>
module attributes {stable_mosaic.version = 11 : i64} {
  func.func @kernel(%arg0: memref<2x1024xf32, #tpu.memory_space<any>>, %arg1: memref<2x768xf32, #tpu.memory_space<any>>, %arg2: memref<2x1280xf32, #tpu.memory_space<any>>, %arg3: memref<2x3072xf32, #tpu.memory_space<any>>, %arg4: memref<3x!tpu.dma_semaphore, #tpu.memory_space<semaphore_mem>>) attributes {dimension_semantics = [], scalar_prefetch = 0 : i64, scratch_operands = 1 : i64, tpu.core_type = #tpu.core_type<tc>} {
    %c0_i32 = arith.constant 0 : i32
    %c0_i32_0 = arith.constant 0 : i32
    %c0_i32_1 = arith.constant 0 : i32
    %0 = tpu.memref_slice %arg0[%c0_i32_0, %c0_i32_1] : memref<2x1024xf32, #tpu.memory_space<any>> -> memref<2x1024xf32, #tpu.memory_space<any>>
    %c0_i32_2 = arith.constant 0 : i32
    %c0_i32_3 = arith.constant 0 : i32
    %1 = tpu.memref_slice %arg3[%c0_i32_2, %c0_i32_3] : memref<2x3072xf32, #tpu.memory_space<any>> -> memref<2x1024xf32, #tpu.memory_space<any>>
    %2 = tpu.memref_slice %arg4[%c0_i32] : memref<3x!tpu.dma_semaphore, #tpu.memory_space<semaphore_mem>> -> memref<1x!tpu.dma_semaphore, #tpu.memory_space<semaphore_mem>>
    %3 = tpu.memref_squeeze %2 : memref<1x!tpu.dma_semaphore, #tpu.memory_space<semaphore_mem>> -> memref<!tpu.dma_semaphore, #tpu.memory_space<semaphore_mem>>
    tpu.enqueue_dma source(%0 : memref<2x1024xf32, #tpu.memory_space<any>>) target(%1 : memref<2x1024xf32, #tpu.memory_space<any>>) target_semaphore(%3 : memref<!tpu.dma_semaphore, #tpu.memory_space<semaphore_mem>>)
    %c1_i32 = arith.constant 1 : i32
    %c0_i32_4 = arith.constant 0 : i32
    %c0_i32_5 = arith.constant 0 : i32
    %4 = tpu.memref_slice %arg1[%c0_i32_4, %c0_i32_5] : memref<2x768xf32, #tpu.memory_space<any>> -> memref<2x768xf32, #tpu.memory_space<any>>
    %c0_i32_6 = arith.constant 0 : i32
    %c1024_i32 = arith.constant 1024 : i32
    %5 = tpu.memref_slice %arg3[%c0_i32_6, %c1024_i32] : memref<2x3072xf32, #tpu.memory_space<any>> -> memref<2x768xf32, #tpu.memory_space<any>>
    %6 = tpu.memref_slice %arg4[%c1_i32] : memref<3x!tpu.dma_semaphore, #tpu.memory_space<semaphore_mem>> -> memref<1x!tpu.dma_semaphore, #tpu.memory_space<semaphore_mem>>
    %7 = tpu.memref_squeeze %6 : memref<1x!tpu.dma_semaphore, #tpu.memory_space<semaphore_mem>> -> memref<!tpu.dma_semaphore, #tpu.memory_space<semaphore_mem>>
    tpu.enqueue_dma source(%4 : memref<2x768xf32, #tpu.memory_space<any>>) target(%5 : memref<2x768xf32, #tpu.memory_space<any>>) target_semaphore(%7 : memref<!tpu.dma_semaphore, #tpu.memory_space<semaphore_mem>>)
    %c2_i32 = arith.constant 2 : i32
    %c0_i32_7 = arith.constant 0 : i32
    %c0_i32_8 = arith.constant 0 : i32
    %8 = tpu.memref_slice %arg2[%c0_i32_7, %c0_i32_8] : memref<2x1280xf32, #tpu.memory_space<any>> -> memref<2x1280xf32, #tpu.memory_space<any>>
    %c0_i32_9 = arith.constant 0 : i32
    %c1792_i32 = arith.constant 1792 : i32
    %9 = tpu.memref_slice %arg3[%c0_i32_9, %c1792_i32] : memref<2x3072xf32, #tpu.memory_space<any>> -> memref<2x1280xf32, #tpu.memory_space<any>>
    %10 = tpu.memref_slice %arg4[%c2_i32] : memref<3x!tpu.dma_semaphore, #tpu.memory_space<semaphore_mem>> -> memref<1x!tpu.dma_semaphore, #tpu.memory_space<semaphore_mem>>
    %11 = tpu.memref_squeeze %10 : memref<1x!tpu.dma_semaphore, #tpu.memory_space<semaphore_mem>> -> memref<!tpu.dma_semaphore, #tpu.memory_space<semaphore_mem>>
    tpu.enqueue_dma source(%8 : memref<2x1280xf32, #tpu.memory_space<any>>) target(%9 : memref<2x1280xf32, #tpu.memory_space<any>>) target_semaphore(%11 : memref<!tpu.dma_semaphore, #tpu.memory_space<semaphore_mem>>)
    %c0_i32_10 = arith.constant 0 : i32
    %c0_i32_11 = arith.constant 0 : i32
    %c0_i32_12 = arith.constant 0 : i32
    %12 = tpu.memref_slice %arg0[%c0_i32_11, %c0_i32_12] : memref<2x1024xf32, #tpu.memory_space<any>> -> memref<2x1024xf32, #tpu.memory_space<any>>
    %c0_i32_13 = arith.constant 0 : i32
    %c0_i32_14 = arith.constant 0 : i32
    %13 = tpu.memref_slice %arg3[%c0_i32_13, %c0_i32_14] : memref<2x3072xf32, #tpu.memory_space<any>> -> memref<2x1024xf32, #tpu.memory_space<any>>
    %14 = tpu.memref_slice %arg4[%c0_i32_10] : memref<3x!tpu.dma_semaphore, #tpu.memory_space<semaphore_mem>> -> memref<1x!tpu.dma_semaphore, #tpu.memory_space<semaphore_mem>>
    %15 = tpu.memref_squeeze %14 : memref<1x!tpu.dma_semaphore, #tpu.memory_space<semaphore_mem>> -> memref<!tpu.dma_semaphore, #tpu.memory_space<semaphore_mem>>
    tpu.wait_dma2 semaphore(%15 : memref<!tpu.dma_semaphore, #tpu.memory_space<semaphore_mem>>) src(%12 : memref<2x1024xf32, #tpu.memory_space<any>>) dst(%13 : memref<2x1024xf32, #tpu.memory_space<any>>)
    %c1_i32_15 = arith.constant 1 : i32
    %c0_i32_16 = arith.constant 0 : i32
    %c0_i32_17 = arith.constant 0 : i32
    %16 = tpu.memref_slice %arg1[%c0_i32_16, %c0_i32_17] : memref<2x768xf32, #tpu.memory_space<any>> -> memref<2x768xf32, #tpu.memory_space<any>>
    %c0_i32_18 = arith.constant 0 : i32
    %c1024_i32_19 = arith.constant 1024 : i32
    %17 = tpu.memref_slice %arg3[%c0_i32_18, %c1024_i32_19] : memref<2x3072xf32, #tpu.memory_space<any>> -> memref<2x768xf32, #tpu.memory_space<any>>
    %18 = tpu.memref_slice %arg4[%c1_i32_15] : memref<3x!tpu.dma_semaphore, #tpu.memory_space<semaphore_mem>> -> memref<1x!tpu.dma_semaphore, #tpu.memory_space<semaphore_mem>>
    %19 = tpu.memref_squeeze %18 : memref<1x!tpu.dma_semaphore, #tpu.memory_space<semaphore_mem>> -> memref<!tpu.dma_semaphore, #tpu.memory_space<semaphore_mem>>
    tpu.wait_dma2 semaphore(%19 : memref<!tpu.dma_semaphore, #tpu.memory_space<semaphore_mem>>) src(%16 : memref<2x768xf32, #tpu.memory_space<any>>) dst(%17 : memref<2x768xf32, #tpu.memory_space<any>>)
    %c2_i32_20 = arith.constant 2 : i32
    %c0_i32_21 = arith.constant 0 : i32
    %c0_i32_22 = arith.constant 0 : i32
    %20 = tpu.memref_slice %arg2[%c0_i32_21, %c0_i32_22] : memref<2x1280xf32, #tpu.memory_space<any>> -> memref<2x1280xf32, #tpu.memory_space<any>>
    %c0_i32_23 = arith.constant 0 : i32
    %c1792_i32_24 = arith.constant 1792 : i32
    %21 = tpu.memref_slice %arg3[%c0_i32_23, %c1792_i32_24] : memref<2x3072xf32, #tpu.memory_space<any>> -> memref<2x1280xf32, #tpu.memory_space<any>>
    %22 = tpu.memref_slice %arg4[%c2_i32_20] : memref<3x!tpu.dma_semaphore, #tpu.memory_space<semaphore_mem>> -> memref<1x!tpu.dma_semaphore, #tpu.memory_space<semaphore_mem>>
    %23 = tpu.memref_squeeze %22 : memref<1x!tpu.dma_semaphore, #tpu.memory_space<semaphore_mem>> -> memref<!tpu.dma_semaphore, #tpu.memory_space<semaphore_mem>>
    tpu.wait_dma2 semaphore(%23 : memref<!tpu.dma_semaphore, #tpu.memory_space<semaphore_mem>>) src(%20 : memref<2x1280xf32, #tpu.memory_space<any>>) dst(%21 : memref<2x1280xf32, #tpu.memory_space<any>>)
    return
  }
}

</mosaic_0001>

<llo_original>
// kernel: tpu_custom_call.1
$region0: #{tpu_custom_call.1}
  #allocation0 [shape = 'u32[]', space=smem, size = 0x4, offset = 0x4, fixed_abs, tag = 'smem constant byte address 0x4 - core index']
  #allocation1 [shape = 'u32[72,128]{1,0:T(1,128)}', space=vmem, size = 0x9000, scoped, tag = 'internal scratch']
  #allocation2 [shape = 's32[3]{0}', space=sflag, size = 0xc, scoped, tag = 'scratch operand']
  #allocation3 [shape = 's32[]', space=sflag, size = 0x4, offset = 0, fixed_abs, tag = 'sflag constant byte address 0x0 - dummy sync flag']
  #allocation4 [shape = 'u32[0]{0}', space=smem, size = 0, offset = 0, fixed_abs, tag = 'smem constant byte address 0x0 - null']
  #allocation5 [shape = 's32[]', space=sflag, size = 0x4, offset = 0, fixed_abs, tag = 'sflag constant byte address 0x0 - dummy sync flag']
  #allocation6 [shape = 'u32[0]{0}', space=smem, size = 0, offset = 0, fixed_abs, tag = 'smem constant byte address 0x0 - null']
  #allocation7 [shape = 's32[]', space=sflag, size = 0x4, offset = 0, fixed_abs, tag = 'sflag constant byte address 0x0 - dummy sync flag']
  #allocation8 [shape = 'u32[0]{0}', space=smem, size = 0, offset = 0, fixed_abs, tag = 'smem constant byte address 0x0 - null']
  %s0 = inlined_call_operand.hbm [shape: f32[2,1024], index: 0, kind: input, shape index: {}]
  %s1 = inlined_call_operand.hbm [shape: f32[2,768], index: 1, kind: input, shape index: {}]
  %s2 = inlined_call_operand.hbm [shape: f32[2,1280], index: 2, kind: input, shape index: {}]
  %s3 = inlined_call_operand.hbm [shape: f32[2,3072], index: 3, kind: output, shape index: {}]
  %s4 = sld [smem:[#allocation0]]
  $region2: #{tpu_custom_call.1} parent=0
    _
  %s6 = ssub.s32 1, %s4
  %s7 = scalar_select 0, %s6, %s4
  %s9 = sshll.u32 1, 14
  %s10 = sxor.u32 4294967295, %s9
  %s12 = sshll.u32 %s0, 4
  %s13 = int_to_ptr.hbm [resolvable:$true] %s12
  %s14 = sshll.u32 %s3, 4
  %s15 = int_to_ptr.hbm [resolvable:$true] %s14
  %18 = dma.general %s13, 256, %s15, [#allocation2], [#allocation3], [#allocation4], 0, 0
  %s19 = scalar_lea.hbm %s3, 16
  %s20 = scalar_lea.sflag [#allocation2], 1
  %s22 = sshll.u32 1, 14
  %s23 = sxor.u32 4294967295, %s22
  %s25 = sshll.u32 %s1, 4
  %s26 = int_to_ptr.hbm [resolvable:$true] %s25
  %s27 = sshll.u32 %s19, 4
  %s28 = int_to_ptr.hbm [resolvable:$true] %s27
  %31 = dma.general %s26, 192, %s28, %s20, [#allocation5], [#allocation6], 0, 0
  %s32 = scalar_lea.hbm %s3, 28
  %s33 = scalar_lea.sflag [#allocation2], 2
  %s35 = sshll.u32 1, 14
  %s36 = sxor.u32 4294967295, %s35
  %s38 = sshll.u32 %s2, 4
  %s39 = int_to_ptr.hbm [resolvable:$true] %s38
  %s40 = sshll.u32 %s32, 4
  %s41 = int_to_ptr.hbm [resolvable:$true] %s40
  %44 = dma.general %s39, 320, %s41, %s33, [#allocation7], [#allocation8], 0, 0
  %s45 = smul.u32 2, 1
  %s46 = smul.u32 %s45, 8
  %s47 = sshll.u32 %s46, 4
  %48 = dma.done [#allocation2], %s47
  %s49 = smul.u32 %s45, 6
  %s50 = sshll.u32 %s49, 4
  %51 = dma.done %s20, %s50
  %s52 = smul.u32 %s45, 10
  %s53 = sshll.u32 %s52, 4
  %54 = dma.done %s33, %s53
  %55 = vsyncmov [#allocation2]
  %s56 = vpop.sfrf %55
  %p57 = scmp.eq.s32.totalorder %s56, 0
  %p58 = pneg %p57
  %60 = shalt.err (%p58)
  %s61 = scalar_lea.sflag [#allocation2], 1
  %62 = vsyncmov %s61
  %s63 = vpop.sfrf %62
  %p64 = scmp.eq.s32.totalorder %s63, 0
  %p65 = pneg %p64
  %67 = shalt.err (%p65)
  %s68 = scalar_lea.sflag [#allocation2], 2
  %69 = vsyncmov %s68
  %s70 = vpop.sfrf %69
  %p71 = scmp.eq.s32.totalorder %s70, 0
  %p72 = pneg %p71
  %74 = shalt.err (%p72)

</llo_original>
